<compile_context>
chip_gen: v6e
topology: v6e:2x2x1
jax: 0.10.0
libtpu: 0.0.40
codegen_flags: <defaults>
</compile_context>

<pallas_src>
import jax
import jax.numpy as jnp
from jax.experimental import pallas as pl
from jax.experimental.pallas import tpu as pltpu


def _round_up(x, m):
    return (x + m - 1) // m * m


# --------------------------------------------------------------------------
# Kernels
# --------------------------------------------------------------------------
def _mf_pred_kernel(u_ref, i_ref, pred_ref):
    # u_ref, i_ref: (D, B_TILE) f32 transposed gathered embeddings
    # pred_ref:     (1, B_TILE) f32 logits (lane-dense)
    prod = u_ref[...] * i_ref[...]                        # VPU elementwise
    pred_ref[...] = jnp.sum(prod, axis=0, keepdims=True)  # sublane reduce


def _mf_train_kernel(n_ref, u_ref, i_ref, lbl_ref,
                     pred_ref, bce_ref, reg_ref):
    # n_ref:    SMEM (1,) i32  -- true (unpadded) batch size
    # u_ref:    VMEM (D, B_TILE) f32
    # i_ref:    VMEM (D, B_TILE) f32
    # lbl_ref:  VMEM (1, B_TILE) f32
    # pred_ref: VMEM (1, B_TILE) f32 logits
    # bce_ref:  VMEM (1, 1, 128) f32 per-tile BCE-sum partial (splatted scalar)
    # reg_ref:  VMEM (1, 1, 128) f32 per-tile L2-sum partial (splatted scalar)
    u = u_ref[...]
    it = i_ref[...]

    prod = u * it                                         # (D, B_TILE)
    pred = jnp.sum(prod, axis=0, keepdims=True)           # (1, B_TILE)
    pred_ref[...] = pred                                  # unmasked lane-dense vst

    b_tile = pred.shape[1]
    gidx = (jax.lax.broadcasted_iota(jnp.int32, (1, b_tile), 1)
            + pl.program_id(0) * b_tile)
    mask = (gidx < n_ref[0]).astype(jnp.float32)          # tail-tile validity mask

    # Numerically stable binary_cross_entropy_with_logits (sum over valid elems):
    #   max(x, 0) - x*y + log1p(exp(-|x|))          (exp/log on the EUP slot)
    x = pred
    y = lbl_ref[...]
    bce = jnp.maximum(x, 0.0) - x * y + jnp.log1p(jnp.exp(-jnp.abs(x)))
    bce_sum = jnp.sum(bce * mask)

    # L2 of the gathered rows; padded columns are zero so no masking needed.
    reg_sum = jnp.sum(u * u + it * it)

    bce_ref[...] = jnp.full(bce_ref.shape, bce_sum, jnp.float32)
    reg_ref[...] = jnp.full(reg_ref.shape, reg_sum, jnp.float32)


# --------------------------------------------------------------------------
# Wrapper
# --------------------------------------------------------------------------
def _gather_transposed(params, user, item, b_pad):
    # Embedding gather + layout plumbing (plain JAX glue): (B, D) -> (D, B_pad)
    u = jnp.take(params["embed_user_GMF"], user, axis=0).astype(jnp.float32)
    it = jnp.take(params["embed_item_GMF"], item, axis=0).astype(jnp.float32)
    B = u.shape[0]
    pad = ((0, 0), (0, b_pad - B))
    return jnp.pad(u.T, pad), jnp.pad(it.T, pad)


def mf_forward(params, user, item, label=None, gamma=0.0, block_b=8192):
    """JAX/Pallas equivalent of MF.forward."""
    B = user.shape[0]
    D = params["embed_user_GMF"].shape[1]

    b_tile = min(block_b, _round_up(B, 128))   # lane-dense, multiple of 128
    b_pad = _round_up(B, b_tile)
    num_tiles = b_pad // b_tile

    u_t, i_t = _gather_transposed(params, user, item, b_pad)

    emb_spec = pl.BlockSpec((D, b_tile), lambda t: (0, t))
    row_spec = pl.BlockSpec((1, b_tile), lambda t: (0, t))
    part_spec = pl.BlockSpec((1, 1, 128), lambda t: (t, 0, 0))
    cparams = pltpu.CompilerParams(dimension_semantics=("parallel",))

    if label is None:
        # Inference path: pred-only kernel (no BCE/reg math, no label DMA).
        pred_row = pl.pallas_call(
            _mf_pred_kernel,
            out_shape=jax.ShapeDtypeStruct((1, b_pad), jnp.float32),
            grid=(num_tiles,),
            in_specs=[emb_spec, emb_spec],
            out_specs=row_spec,
            compiler_params=cparams,
        )(u_t, i_t)
        return pred_row[0, :B]

    lbl_row = jnp.pad(label.astype(jnp.float32).reshape(1, B),
                      ((0, 0), (0, b_pad - B)))
    n_valid = jnp.array([B], jnp.int32)

    pred_row, bce_part, reg_part = pl.pallas_call(
        _mf_train_kernel,
        out_shape=(
            jax.ShapeDtypeStruct((1, b_pad), jnp.float32),            # logits
            jax.ShapeDtypeStruct((num_tiles, 1, 128), jnp.float32),   # bce partials
            jax.ShapeDtypeStruct((num_tiles, 1, 128), jnp.float32),   # reg partials
        ),
        grid=(num_tiles,),
        in_specs=[
            pl.BlockSpec(memory_space=pltpu.MemorySpace.SMEM),        # n_valid
            emb_spec, emb_spec, row_spec,
        ],
        out_specs=(row_spec, part_spec, part_spec),
        compiler_params=cparams,
    )(n_valid, u_t, i_t, lbl_row)

    bce_sum = jnp.sum(bce_part[:, 0, 0])
    reg_sum = jnp.sum(reg_part[:, 0, 0])
    loss = bce_sum / B
    if gamma > 0:
        loss = loss + gamma * reg_sum / B
    return pred_row[0, :B], loss


def init_mf_params(key, user_num, item_num, gmf_emb_size=16):
    # TODO(synk): scale_grad_by_freq only affects the backward pass; no
    # forward-pass equivalent needed.
    std = jnp.sqrt(1.0 / gmf_emb_size)
    k_u, k_i = jax.random.split(key)
    return {
        "embed_user_GMF": std * jax.random.normal(
            k_u, (user_num, gmf_emb_size), jnp.float32),
        "embed_item_GMF": std * jax.random.normal(
            k_i, (item_num, gmf_emb_size), jnp.float32),
    }


# --------------------------------------------------------------------------
# Pure-JAX reference (for the correctness check)
# --------------------------------------------------------------------------
def _reference(params, user, item, label, gamma):
    u = jnp.take(params["embed_user_GMF"], user, axis=0)
    it = jnp.take(params["embed_item_GMF"], item, axis=0)
    pred = jnp.sum(u * it, axis=-1)
    x, y = pred, label.astype(jnp.float32)
    bce = jnp.mean(jnp.maximum(x, 0.0) - x * y + jnp.log1p(jnp.exp(-jnp.abs(x))))
    reg = gamma * (jnp.sum(it * it) + jnp.sum(u * u)) / x.shape[0]
    return pred, bce + reg


if __name__ == "__main__":
    USER_NUM, ITEM_NUM, EMB = 32, 64, 16
    GAMMA = 0.1

    key = jax.random.PRNGKey(0)
    k_params, k_user, k_item, k_label = jax.random.split(key, 4)
    params = init_mf_params(k_params, USER_NUM, ITEM_NUM, EMB)

    # --- small batch (single tile, padded 8 -> 128) --------------------------
    BATCH = 8
    user = jax.random.randint(k_user, (BATCH,), 0, USER_NUM, jnp.int32)
    item = jax.random.randint(k_item, (BATCH,), 0, ITEM_NUM, jnp.int32)
    label = jax.random.bernoulli(k_label, 0.5, (BATCH,)).astype(jnp.float32)

    pred, loss = mf_forward(params, user, item, label=label, gamma=GAMMA)
    pred = jax.block_until_ready(pred)
    loss = jax.block_until_ready(loss)
    pred_only = jax.block_until_ready(mf_forward(params, user, item))

    ref_pred, ref_loss = _reference(params, user, item, label, GAMMA)
    assert pred.shape == (BATCH,) and pred_only.shape == (BATCH,)
    assert jnp.allclose(pred, ref_pred, atol=1e-5, rtol=1e-5)
    assert jnp.allclose(pred_only, ref_pred, atol=1e-5, rtol=1e-5)
    assert jnp.allclose(loss, ref_loss, atol=1e-5, rtol=1e-5)

    # --- multi-tile batch with a masked tail (200 elems, block_b=128) --------
    B2 = 200
    k_u2, k_i2, k_l2 = jax.random.split(jax.random.PRNGKey(1), 3)
    user2 = jax.random.randint(k_u2, (B2,), 0, USER_NUM, jnp.int32)
    item2 = jax.random.randint(k_i2, (B2,), 0, ITEM_NUM, jnp.int32)
    label2 = jax.random.bernoulli(k_l2, 0.5, (B2,)).astype(jnp.float32)

    pred2, loss2 = mf_forward(params, user2, item2, label=label2,
                              gamma=GAMMA, block_b=128)
    pred2 = jax.block_until_ready(pred2)
    loss2 = jax.block_until_ready(loss2)
    ref_pred2, ref_loss2 = _reference(params, user2, item2, label2, GAMMA)
    assert pred2.shape == (B2,)
    assert jnp.allclose(pred2, ref_pred2, atol=1e-5, rtol=1e-5)
    assert jnp.allclose(loss2, ref_loss2, atol=1e-5, rtol=1e-5)

    print("KERNEL_OK")
</pallas_src>

<mosaic_0001>
module attributes {stable_mosaic.version = 11 : i64} {
  func.func @_mf_train_kernel(%arg0: i32, %arg1: memref<1xi32, #tpu.memory_space<smem>>, %arg2: memref<16x128xf32, #tpu.memory_space<vmem>>, %arg3: memref<16x128xf32, #tpu.memory_space<vmem>>, %arg4: memref<1x128xf32, #tpu.memory_space<vmem>>, %arg5: memref<1x128xf32, #tpu.memory_space<vmem>>, %arg6: memref<1x1x128xf32, #tpu.memory_space<vmem>>, %arg7: memref<1x1x128xf32, #tpu.memory_space<vmem>>) attributes {dimension_semantics = [#tpu.dimension_semantics<parallel>], iteration_bounds = array<i64: 1>, scalar_prefetch = 0 : i64, scratch_operands = 0 : i64, tpu.core_type = #tpu.core_type<tc>, window_params = [{transform_indices = @transform_0, window_bounds = array<i64: 1>}, {transform_indices = @transform_1, window_bounds = array<i64: 16, 128>}, {transform_indices = @transform_2, window_bounds = array<i64: 16, 128>}, {transform_indices = @transform_3, window_bounds = array<i64: 1, 128>}, {transform_indices = @transform_4, window_bounds = array<i64: 1, 128>}, {transform_indices = @transform_5, window_bounds = array<i64: 1, 1, 128>}, {transform_indices = @transform_6, window_bounds = array<i64: 1, 1, 128>}]} {
    %c0 = arith.constant 0 : index
    %c0_0 = arith.constant 0 : index
    %0 = vector.load %arg2[%c0, %c0_0] : memref<16x128xf32, #tpu.memory_space<vmem>>, vector<16x128xf32>
    %c0_1 = arith.constant 0 : index
    %c0_2 = arith.constant 0 : index
    %1 = vector.load %arg3[%c0_1, %c0_2] : memref<16x128xf32, #tpu.memory_space<vmem>>, vector<16x128xf32>
    %2 = arith.mulf %0, %1 : vector<16x128xf32>
    %cst = arith.constant dense<0.000000e+00> : vector<128xf32>
    %3 = vector.multi_reduction <add>, %2, %cst [0] : vector<16x128xf32> to vector<128xf32>
    %4 = vector.shape_cast %3 : vector<128xf32> to vector<1x128xf32>
    %c0_3 = arith.constant 0 : index
    %c0_4 = arith.constant 0 : index
    %5 = vector.load %arg5[%c0_3, %c0_4] : memref<1x128xf32, #tpu.memory_space<vmem>>, vector<1x128xf32>
    tpu.vector_store %arg5[%c0_3, %c0_4], %4 {strides = array<i32>} : memref<1x128xf32, #tpu.memory_space<vmem>>, vector<1x128xf32>,
    %6 = tpu.iota {dimensions = array<i32: 1>} : vector<1x128xi32>
    %c128_i32 = arith.constant 128 : i32
    %7 = arith.muli %arg0, %c128_i32 : i32
    %8 = vector.broadcast %7 : i32 to vector<1x128xi32>
    %9 = arith.addi %6, %8 : vector<1x128xi32>
    %c0_5 = arith.constant 0 : index
    %10 = memref.load %arg1[%c0_5] : memref<1xi32, #tpu.memory_space<smem>>
    %11 = vector.broadcast %10 : i32 to vector<1x128xi32>
    %12 = arith.cmpi slt, %9, %11 : vector<1x128xi32>
    %13 = arith.extui %12 : vector<1x128xi1> to vector<1x128xi32>
    %14 = arith.sitofp %13 : vector<1x128xi32> to vector<1x128xf32>
    %c0_6 = arith.constant 0 : index
    %c0_7 = arith.constant 0 : index
    %15 = vector.load %arg4[%c0_6, %c0_7] : memref<1x128xf32, #tpu.memory_space<vmem>>, vector<1x128xf32>
    %cst_8 = arith.constant 0.000000e+00 : f32
    %16 = vector.broadcast %cst_8 : f32 to vector<1x128xf32>
    %17 = arith.maximumf %4, %16 : vector<1x128xf32>
    %18 = arith.mulf %4, %15 : vector<1x128xf32>
    %19 = arith.subf %17, %18 : vector<1x128xf32>
    %20 = math.absf %4 : vector<1x128xf32>
    %cst_9 = arith.constant 0.000000e+00 : f32
    %21 = vector.broadcast %cst_9 : f32 to vector<1x128xf32>
    %22 = arith.subf %21, %20 : vector<1x128xf32>
    %23 = math.exp %22 : vector<1x128xf32>
    %24 = math.log1p %23 : vector<1x128xf32>
    %25 = arith.addf %19, %24 : vector<1x128xf32>
    %26 = arith.mulf %25, %14 : vector<1x128xf32>
    %27 = vector.shape_cast %26 : vector<1x128xf32> to vector<1x1x128xf32>
    %cst_10 = arith.constant dense<0.000000e+00> : vector<1xf32>
    %28 = vector.multi_reduction <add>, %27, %cst_10 [1, 2] : vector<1x1x128xf32> to vector<1xf32>
    %29 = vector.shape_cast %28 : vector<1xf32> to vector<1x1x1xf32>
    %30 = vector.extract %29[0, 0, 0] : f32 from vector<1x1x1xf32>
    %31 = arith.mulf %0, %0 : vector<16x128xf32>
    %32 = arith.mulf %1, %1 : vector<16x128xf32>
    %33 = arith.addf %31, %32 : vector<16x128xf32>
    %34 = vector.shape_cast %33 : vector<16x128xf32> to vector<1x16x128xf32>
    %cst_11 = arith.constant dense<0.000000e+00> : vector<1xf32>
    %35 = vector.multi_reduction <add>, %34, %cst_11 [1, 2] : vector<1x16x128xf32> to vector<1xf32>
    %36 = vector.shape_cast %35 : vector<1xf32> to vector<1x1x1xf32>
    %37 = vector.extract %36[0, 0, 0] : f32 from vector<1x1x1xf32>
    %38 = vector.broadcast %30 : f32 to vector<1x1x128xf32>
    %c0_12 = arith.constant 0 : index
    %c0_13 = arith.constant 0 : index
    %c0_14 = arith.constant 0 : index
    %39 = vector.load %arg6[%c0_12, %c0_13, %c0_14] : memref<1x1x128xf32, #tpu.memory_space<vmem>>, vector<1x1x128xf32>
    tpu.vector_store %arg6[%c0_12, %c0_13, %c0_14], %38 {strides = array<i32>} : memref<1x1x128xf32, #tpu.memory_space<vmem>>, vector<1x1x128xf32>,
    %40 = vector.broadcast %37 : f32 to vector<1x1x128xf32>
    %c0_15 = arith.constant 0 : index
    %c0_16 = arith.constant 0 : index
    %c0_17 = arith.constant 0 : index
    %41 = vector.load %arg7[%c0_15, %c0_16, %c0_17] : memref<1x1x128xf32, #tpu.memory_space<vmem>>, vector<1x1x128xf32>
    tpu.vector_store %arg7[%c0_15, %c0_16, %c0_17], %40 {strides = array<i32>} : memref<1x1x128xf32, #tpu.memory_space<vmem>>, vector<1x1x128xf32>,
    return
  }
  func.func @transform_0(%arg0: i32) -> i32 {
    %c0_i32 = arith.constant 0 : i32
    %c0_i32_0 = arith.constant 0 : i32
    return %c0_i32 : i32
  }
  func.func @transform_1(%arg0: i32) -> (i32, i32) {
    %c0_i32 = arith.constant 0 : i32
    %c0_i32_0 = arith.constant 0 : i32
    return %c0_i32, %arg0 : i32, i32
  }
  func.func @transform_2(%arg0: i32) -> (i32, i32) {
    %c0_i32 = arith.constant 0 : i32
    %c0_i32_0 = arith.constant 0 : i32
    return %c0_i32, %arg0 : i32, i32
  }
  func.func @transform_3(%arg0: i32) -> (i32, i32) {
    %c0_i32 = arith.constant 0 : i32
    %c0_i32_0 = arith.constant 0 : i32
    return %c0_i32, %arg0 : i32, i32
  }
  func.func @transform_4(%arg0: i32) -> (i32, i32) {
    %c0_i32 = arith.constant 0 : i32
    %c0_i32_0 = arith.constant 0 : i32
    return %c0_i32, %arg0 : i32, i32
  }
  func.func @transform_5(%arg0: i32) -> (i32, i32, i32) {
    %c0_i32 = arith.constant 0 : i32
    %c0_i32_0 = arith.constant 0 : i32
    %c0_i32_1 = arith.constant 0 : i32
    return %arg0, %c0_i32, %c0_i32_0 : i32, i32, i32
  }
  func.func @transform_6(%arg0: i32) -> (i32, i32, i32) {
    %c0_i32 = arith.constant 0 : i32
    %c0_i32_0 = arith.constant 0 : i32
    %c0_i32_1 = arith.constant 0 : i32
    return %arg0, %c0_i32, %c0_i32_0 : i32, i32, i32
  }
}

</mosaic_0001>

<llo_original>
// kernel: tpu_custom_call.1
$region0: #{tpu_custom_call.1}
  #allocation0 [shape = 'u32[]', space=smem, size = 0x4, offset = 0x4, fixed_abs, tag = 'smem constant byte address 0x4 - core index']
  #allocation1 [shape = 'u32[144,128]{1,0:T(1,128)}', space=vmem, size = 0x12000, scoped, tag = 'internal scratch']
  #allocation2 [shape = 's32[1]{0:T(128)S(6)}', space=smem, size = 0x200, scoped, tag = 'scoped memory for tpu_custom_call.1']
  %s0 = inlined_call_operand.<no memory space> [shape: s32[1], index: 0, kind: input, shape index: {}]
  %s1 = inlined_call_operand.hbm [shape: f32[16,128], index: 1, kind: input, shape index: {}]
  %s2 = inlined_call_operand.hbm [shape: f32[16,128], index: 2, kind: input, shape index: {}]
  %s3 = inlined_call_operand.vmem [shape: f32[1,128], index: 3, kind: input, shape index: {}]
  %s4 = inlined_call_operand.hbm [shape: f32[1,128], index: 4, kind: output, shape index: {0}]
  %s5 = inlined_call_operand.hbm [shape: f32[1,1,128], index: 5, kind: output, shape index: {1}]
  %s6 = inlined_call_operand.hbm [shape: f32[1,1,128], index: 6, kind: output, shape index: {2}]
  %7 = xla_tuple %s4, %s5, %s6
  %s8 = sld [smem:[#allocation0]]
  $region50: #{tpu_custom_call.1} parent=0
    _
  %s10 = ssub.s32 1, %s8
  %s11 = scalar_select 0, %s10, %s8
  %12 = sst [smem:[#allocation2]] %s0
  $region1: #{tpu_custom_call.1} parent=0
    #allocation3 [shape = 'u8[8192]{0}', space=vmem, size = 0x2000, scoped, tag = 'input window, operand 1, single buffered']
    #allocation4 [shape = 's32[1]{0}', space=sflag, size = 0x4, scoped, tag = 'scoped memory for tpu_custom_call.1']
    #allocation5 [shape = 's32[1]{0}', space=sflag, size = 0x4, scoped, tag = 'scoped memory for tpu_custom_call.1']
    #allocation6 [shape = 'u8[8192]{0}', space=vmem, size = 0x2000, scoped, tag = 'input window, operand 2, single buffered']
    #allocation7 [shape = 's32[1]{0}', space=sflag, size = 0x4, scoped, tag = 'scoped memory for tpu_custom_call.1']
    #allocation8 [shape = 'u8[512]{0}', space=vmem, size = 0x400, scoped, tag = 'output window, operand 0, single buffered']
    #allocation9 [shape = 'u8[512]{0}', space=vmem, size = 0x400, scoped, tag = 'output window, operand 1, single buffered']
    #allocation10 [shape = 's32[1]{0}', space=sflag, size = 0x4, scoped, tag = 'scoped memory for tpu_custom_call.1']
    #allocation11 [shape = 'u8[512]{0}', space=vmem, size = 0x400, scoped, tag = 'output window, operand 2, single buffered']
    %13 = vsyncpa [#allocation4], 0
    %14 = vsyncpa [#allocation7], 0
    %15 = vsyncpa [#allocation5], 0
    %16 = vsyncpa [#allocation10], 0
    // Predicated region
    $region2: #{tpu_custom_call.1} parent=1 // pred_check
      _
    $region3: #{tpu_custom_call.1} parent=1 // pred_check_branch
      %18 = sbr.rel (0) target = $region5
    $region4: #{tpu_custom_call.1} parent=1 // pred_region
      _
    $region5: #{tpu_custom_call.1} parent=1 // pred_fallthru
      _
    // Predicated region
    $region6: #{tpu_custom_call.1} parent=1 // pred_check
      _
    $region7: #{tpu_custom_call.1} parent=1 // pred_check_branch
      %20 = sbr.rel (0) target = $region9
    $region8: #{tpu_custom_call.1} parent=1 // pred_region
      %s22 = ssub.s32 256, 256
      %23 = vsyncadd [#allocation4], %s22
      %s24 = sshll.u32 [#allocation3], 4
      %s25 = int_to_ptr.vmem [resolvable:$true] %s24
      %30 = dma.hbm_to_vmem [thread:$0]  %s1, 256, %s25, [#allocation4], 128, 128, 8
    $region9: #{tpu_custom_call.1} parent=1 // pred_fallthru
      _
    // Predicated region
    $region10: #{tpu_custom_call.1} parent=1 // pred_check
      _
    $region11: #{tpu_custom_call.1} parent=1 // pred_check_branch
      %32 = sbr.rel (0) target = $region13
    $region12: #{tpu_custom_call.1} parent=1 // pred_region
      %s34 = ssub.s32 256, 256
      %35 = vsyncadd [#allocation7], %s34
      %s36 = sshll.u32 [#allocation6], 4
      %s37 = int_to_ptr.vmem [resolvable:$true] %s36
      %42 = dma.hbm_to_vmem [thread:$0]  %s2, 256, %s37, [#allocation7], 128, 128, 8
    $region13: #{tpu_custom_call.1} parent=1 // pred_fallthru
      _
    // Predicated region
    $region14: #{tpu_custom_call.1} parent=1 // pred_check
      _
    $region15: #{tpu_custom_call.1} parent=1 // pred_check_branch
      %44 = sbr.rel (0) target = $region17
    $region16: #{tpu_custom_call.1} parent=1 // pred_region
      _
    $region17: #{tpu_custom_call.1} parent=1 // pred_fallthru
      _
    // Predicated region
    $region18: #{tpu_custom_call.1} parent=1 // pred_check
      _
    $region19: #{tpu_custom_call.1} parent=1 // pred_check_branch
      %46 = sbr.rel (0) target = $region21
    $region20: #{tpu_custom_call.1} parent=1 // pred_region
      %47 = dma.done [#allocation4], 256
    $region21: #{tpu_custom_call.1} parent=1 // pred_fallthru
      _
    // Predicated region
    $region22: #{tpu_custom_call.1} parent=1 // pred_check
      _
    $region23: #{tpu_custom_call.1} parent=1 // pred_check_branch
      %49 = sbr.rel (0) target = $region25
    $region24: #{tpu_custom_call.1} parent=1 // pred_region
      %50 = dma.done [#allocation7], 256
    $region25: #{tpu_custom_call.1} parent=1 // pred_fallthru
      _
    %v51 = vld [vmem:[#allocation3] sm:$0xff]
    %v52 = vld [vmem:[#allocation3 + $0x8] sm:$0xff]
    %v53 = vld [vmem:[#allocation6] sm:$0xff]
    %v54 = vld [vmem:[#allocation6 + $0x8] sm:$0xff]
    %v55 = vmul.f32 %v51, %v53
    %v56 = vmul.f32 %v52, %v54
    %v57 = vadd.f32 %v55, %v56
    %v58 = vrot.slane %v57, 4
    %v59 = vadd.f32 %v57, %v58
    %v60 = vrot.slane %v59, 2
    %v61 = vadd.f32 %v59, %v60
    %v62 = vrot.slane %v61, 1
    %v63 = vadd.f32 %v61, %v62
    %64 = vst [vmem:[#allocation8] sm:$0x1] %v63
    %v65 = vlaneseq
    %v66 = vand.u32 %v65, 127
    %s67 = smul.u32 0, 128
    %v68 = vstv %s67
    %v69 = vadd.s32 %v66, %v68
    %s70 = sld [smem:[#allocation2]]
    %v71 = vstv %s70
    %vm72 = vcmp.lt.s32.totalorder %v69, %v71
    %v73 = vsel %vm72, 1, 0
    %v74 = vcvt.s32.f32 %v73
    %v75 = vld [vmem:[%s3] sm:$0x1]
    %v76 = vmax.f32 %v63, 0.0
    %v77 = vmul.f32 %v63, %v75
    %v78 = vsub.f32 %v76, %v77
    %v79 = vand.u32 2147483647, %v63
    %v80 = vsub.f32 0.0, %v79
    %v81 = vmul.f32 %v80, 1.442695
    %v82 = vpow.pop %v81
    %v83 = vadd.f32 %v82, 1.0
    %v84 = vlog2.pop %v83
    %v85 = vmul.f32 %v84, 0.6931472
    %v86 = vmul.f32 -0.5, %v82
    %v87 = vadd.f32 %v86, 1.0
    %v88 = vmul.f32 %v87, %v82
    %v89 = vand.u32 2147483647, %v82
    %vm90 = vcmp.lt.f32.partialorder %v89, 0.0004427343
    %v91 = vsel %vm90, %v88, %v85
    %v92 = vadd.f32 %v78, %v91
    %v93 = vmul.f32 %v92, %v74
    %vm94 = vcmask 1040384
    %v95 = vsel %vm94, %v93, 0.0
    %96 = vadd.xlane.f32.xlu0 %v95
    %v97 = vpop.xlane.xlu0 %96
    %v98 = vrot.slane %v97, 4
    %v99 = vadd.f32 %v97, %v98
    %v100 = vrot.slane %v99, 2
    %v101 = vadd.f32 %v99, %v100
    %v102 = vrot.slane %v101, 1
    %v103 = vadd.f32 %v101, %v102
    %s104 = vtos %v103
    %v105 = vmul.f32 %v51, %v51
    %v106 = vmul.f32 %v52, %v52
    %v107 = vmul.f32 %v53, %v53
    %v108 = vmul.f32 %v54, %v54
    %v109 = vadd.f32 %v105, %v107
    %v110 = vadd.f32 %v106, %v108
    %v111 = vadd.f32 %v109, %v110
    %112 = vadd.xlane.f32.xlu0 %v111
    %v113 = vpop.xlane.xlu0 %112
    %v114 = vrot.slane %v113, 4
    %v115 = vadd.f32 %v113, %v114
    %v116 = vrot.slane %v115, 2
    %v117 = vadd.f32 %v115, %v116
    %v118 = vrot.slane %v117, 1
    %v119 = vadd.f32 %v117, %v118
    %s120 = vtos %v119
    %v121 = vstv %s104
    %122 = vst [vmem:[#allocation9] sm:$0x1] %v121
    %v123 = vstv %s120
    %124 = vst [vmem:[#allocation11] sm:$0x1] %v123
    // Predicated region
    $region26: #{tpu_custom_call.1} parent=1 // pred_check
      _
    $region27: #{tpu_custom_call.1} parent=1 // pred_check_branch
      %126 = sbr.rel (0) target = $region29
    $region28: #{tpu_custom_call.1} parent=1 // pred_region
      %s128 = ssub.s32 16, 16
      %129 = vsyncadd [#allocation5], %s128
      %s131 = sshll.u32 [#allocation8], 4
      %s132 = int_to_ptr.vmem [resolvable:$true] %s131
      %134 = dma.vmem_to_hbm [thread:$0]  %s132, 16, %s4, [#allocation5]
    $region29: #{tpu_custom_call.1} parent=1 // pred_fallthru
      _
    // Predicated region
    $region30: #{tpu_custom_call.1} parent=1 // pred_check
      _
    $region31: #{tpu_custom_call.1} parent=1 // pred_check_branch
      %136 = sbr.rel (0) target = $region33
    $region32: #{tpu_custom_call.1} parent=1 // pred_region
      %s138 = ssub.s32 16, 16
      %139 = vsyncadd [#allocation10], %s138
      %s141 = sshll.u32 [#allocation9], 4
      %s142 = int_to_ptr.vmem [resolvable:$true] %s141
      %144 = dma.vmem_to_hbm [thread:$0]  %s142, 16, %s5, [#allocation10]
    $region33: #{tpu_custom_call.1} parent=1 // pred_fallthru
      _
    // Predicated region
    $region34: #{tpu_custom_call.1} parent=1 // pred_check
      _
    $region35: #{tpu_custom_call.1} parent=1 // pred_check_branch
      %146 = sbr.rel (0) target = $region37
    $region36: #{tpu_custom_call.1} parent=1 // pred_region
      %s148 = ssub.s32 16, 16
      %149 = vsyncadd [#allocation10], %s148
      %s151 = sshll.u32 [#allocation11], 4
      %s152 = int_to_ptr.vmem [resolvable:$true] %s151
      %154 = dma.vmem_to_hbm [thread:$0]  %s152, 16, %s6, [#allocation10]
    $region37: #{tpu_custom_call.1} parent=1 // pred_fallthru
      _
    // Predicated region
    $region38: #{tpu_custom_call.1} parent=1 // pred_check
      _
    $region39: #{tpu_custom_call.1} parent=1 // pred_check_branch
      %156 = sbr.rel (0) target = $region41
    $region40: #{tpu_custom_call.1} parent=1 // pred_region
      %157 = dma.done [#allocation5], 16
    $region41: #{tpu_custom_call.1} parent=1 // pred_fallthru
      _
    // Predicated region
    $region42: #{tpu_custom_call.1} parent=1 // pred_check
      _
    $region43: #{tpu_custom_call.1} parent=1 // pred_check_branch
      %159 = sbr.rel (0) target = $region45
    $region44: #{tpu_custom_call.1} parent=1 // pred_region
      %160 = dma.done [#allocation10], 16
    $region45: #{tpu_custom_call.1} parent=1 // pred_fallthru
      _
    // Predicated region
    $region46: #{tpu_custom_call.1} parent=1 // pred_check
      _
    $region47: #{tpu_custom_call.1} parent=1 // pred_check_branch
      %162 = sbr.rel (0) target = $region49
    $region48: #{tpu_custom_call.1} parent=1 // pred_region
      %163 = dma.done [#allocation10], 16
    $region49: #{tpu_custom_call.1} parent=1 // pred_fallthru
      _
    %164 = vsyncpa [#allocation4], 1
    %165 = vsyncpa [#allocation7], 1
    %166 = vsyncpa [#allocation5], 1
    %167 = vsyncpa [#allocation10], 1

</llo_original>
